<compile_context>
chip_gen: v7x
topology: tpu7x:2x2x1
jax: 0.10.0
libtpu: 0.0.40
codegen_flags: <defaults>
</compile_context>

<pallas_src>
import functools

import jax
import jax.numpy as jnp
from jax.experimental import pallas as pl
from jax.experimental.pallas import tpu as pltpu

EPS = 1e-5  # PyTorch default for both InstanceNorm2d and BatchNorm2d


# ----------------------------- Pallas kernel --------------------------------
def resnet_block_kernel(x_ref, w1_ref, w2_ref, g1_ref, be1_ref,
                        g2_ref, be2_ref, wr_ref, br_ref,
                        o_ref,
                        h1_cache, skip_cache, h2_cache, bn1_sq, bn2_sq,
                        *, n, tb, hw, pre, cache_h2):
    """All tensors float32, pixels-on-lanes layout.

    x_ref : (tb, Cin, HW)     w1/wr : (Cout, Cin)     w2 : (Cout, Cout)
    g*/be*/br : (Cout, 1)     o_ref : (tb, Cout, HW)
    h1_cache/skip_cache[/h2_cache] : (N, Cout, HW) VMEM activation caches
    bn*_sq : (Cout, 1) VMEM accumulators (persist over the whole grid)
    """
    p = pl.program_id(0)   # phase: 0 = fill caches + BN1 stats, 1 = BN2 stats, 2 = emit
    i = pl.program_id(1)   # sample-batch index

    inv_cnt = 1.0 / float(n * hw)
    row = pl.multiple_of(i * tb, tb)
    sl = pl.ds(row, tb)    # rows of the activation caches handled this step

    def conv1x1(h, w_ref):
        """(tb, Cin, HW) x (Cout, Cin) -> (tb, Cout, HW)."""
        w = w_ref[...]
        cin = w.shape[1]
        if cin <= 32:
            # Tiny contraction: unrolled VPU broadcast-FMAs.  An MXU dot at
            # these sizes is <10% utilized and pays push/pop latency.
            out = w[:, 0:1][None] * h[:, 0:1, :]
            for k in range(1, cin):
                out = out + w[:, k:k + 1][None] * h[:, k:k + 1, :]
            return out
        # General path: per-sample default-precision MXU matmuls (tb static).
        return jnp.stack(
            [jnp.dot(w, h[b], preferred_element_type=jnp.float32)
             for b in range(h.shape[0])], axis=0)

    def inorm(h):
        """InstanceNorm2d over the HW lane axis; also returns the biased var."""
        m = jnp.mean(h, axis=-1, keepdims=True)
        c = h - m
        v = jnp.mean(jnp.square(c), axis=-1, keepdims=True)
        return c * jax.lax.rsqrt(v + EPS), v

    def bn_scale_shift(sq_ref, g_ref, be_ref):
        # Post-IN activations have exactly zero per-(n, c) mean, so the batch
        # mean is 0 and the biased batch variance is E[x^2] built from the
        # closed-form per-sample sums of squares accumulated in sq_ref.
        var = sq_ref[...] * inv_cnt                    # (Cout, 1)
        scale = g_ref[...] * jax.lax.rsqrt(var + EPS)  # (Cout, 1)
        shift = be_ref[...]
        return scale[None], shift[None]                # (1, Cout, 1)

    def closed_form_sq(v):
        # sum over HW of IN(h)^2 == HW * v / (v + eps); reduce over samples.
        return jnp.sum(float(hw) * v / (v + EPS), axis=0)   # (Cout, 1)

    # ---- phase 0: conv1 + IN1, fill caches, accumulate BN-1 statistics -----
    @pl.when(p == 0)
    def _():
        @pl.when(i == 0)
        def _():
            bn1_sq[...] = jnp.zeros_like(bn1_sq)
            bn2_sq[...] = jnp.zeros_like(bn2_sq)

        x = x_ref[...]                                  # (tb, Cin, HW)
        # conv1 bias dropped: cancelled exactly by the IN mean subtraction.
        h1, v1 = inorm(conv1x1(x, w1_ref))
        h1_cache[sl] = h1
        if pre:
            skip_cache[sl] = conv1x1(x, wr_ref) + br_ref[...][None]
        else:
            skip_cache[sl] = x   # requires Cin == Cout (checked in wrapper)
        bn1_sq[...] += closed_form_sq(v1)

    # ---- phase 1: BN1 + relu + conv2 + IN2, accumulate BN-2 statistics -----
    @pl.when(p == 1)
    def _():
        h1 = h1_cache[sl]
        s1, t1 = bn_scale_shift(bn1_sq, g1_ref, be1_ref)
        a1 = jnp.maximum(h1 * s1 + t1, 0.0)
        h2, v2 = inorm(conv1x1(a1, w2_ref))   # conv2 bias dropped (cancelled by IN2)
        if cache_h2:
            h2_cache[sl] = h2
        bn2_sq[...] += closed_form_sq(v2)

    # ---- phase 2: BN2, residual add, relu, lane-dense output store ---------
    @pl.when(p == 2)
    def _():
        if cache_h2:
            h2 = h2_cache[sl]
        else:
            # Recompute path for activation sets too large to cache h2.
            h1 = h1_cache[sl]
            s1, t1 = bn_scale_shift(bn1_sq, g1_ref, be1_ref)
            a1 = jnp.maximum(h1 * s1 + t1, 0.0)
            h2, _ = inorm(conv1x1(a1, w2_ref))
        s2, t2 = bn_scale_shift(bn2_sq, g2_ref, be2_ref)
        o_ref[...] = jnp.maximum(h2 * s2 + t2 + skip_cache[sl], 0.0)


# ------------------------------- wrapper -------------------------------------
def _largest_divisor_leq(n, cap):
    cap = max(1, min(n, cap))
    for d in range(cap, 0, -1):
        if n % d == 0:
            return d
    return 1


def resnet_block(x_nchw, params, *, pre):
    N, Cin, H, W = x_nchw.shape
    Cout = params["w1"].shape[0]
    HW = H * W
    if not pre and Cin != Cout:
        raise ValueError(
            f"pre=False requires inchannel == outchannel (got {Cin} vs {Cout}): "
            "the residual branch is the raw input.")

    # NCHW -> (N, C, H*W): pure reshape, no transpose / extra HBM pass.
    # NOTE: HW a multiple of 128 keeps every load/store lane-dense (unmasked
    # vst); other sizes remain correct but pay masked partial stores.
    x3d = x_nchw.reshape(N, Cin, HW).astype(jnp.float32)
    f32 = 4

    # ---- per-generation VMEM budgeting (v7x: 64 MiB; v5e/v6e: 128 MiB) -----
    try:
        vmem_phys = int(pltpu.get_tpu_info().vmem_capacity_bytes)
    except Exception:  # pragma: no cover - conservative (v7x-safe) fallback
        vmem_phys = 64 * 1024 * 1024
    budget = int(vmem_phys * 0.70)

    per_sample_cache = Cout * HW * f32            # one cached activation plane
    base_cache = 2 * N * per_sample_cache         # h1 + skip (always cached)
    cache_h2 = (base_cache + N * per_sample_cache) <= budget // 2
    cache_bytes = base_cache + (N * per_sample_cache if cache_h2 else 0)
    if base_cache > budget // 2:
        # TODO(synk): add a streaming recompute path (re-read x per phase) for
        # activation sets that do not fit on-chip; not needed at these shapes.
        raise NotImplementedError(
            "activation cache exceeds the VMEM budget; streaming fallback not "
            "implemented")

    # Samples per grid step: largest divisor of N whose streaming tiles
    # (double-buffered x input + output) fit the remaining budget.
    per_sample_stream = 2 * (Cin + Cout) * HW * f32
    tb = _largest_divisor_leq(
        N, max(1, (budget - cache_bytes) // per_sample_stream))
    nb = N // tb

    param_bytes = sum(int(params[k].size) * f32
                      for k in ("w1", "w2", "wr", "br", "g1", "be1", "g2", "be2"))
    needed = cache_bytes + tb * per_sample_stream + 2 * param_bytes + (2 << 20)
    vmem_limit = min(int(vmem_phys * 0.9), max(needed, 16 * 1024 * 1024))

    kernel = functools.partial(resnet_block_kernel, n=N, tb=tb, hw=HW, pre=pre,
                               cache_h2=cache_h2)

    const_map = lambda p, i: (0, 0)
    # x is only consumed in phase 0; pin its block index afterwards so Pallas
    # fetches each x block from HBM exactly once.
    x_map = lambda p, i: (i * (p == 0).astype(jnp.int32), 0, 0)
    # Output blocks only advance (and hence write back) during phase 2.
    out_map = lambda p, i: (i * (p == 2).astype(jnp.int32), 0, 0)

    scratch = [
        pltpu.VMEM((N, Cout, HW), jnp.float32),                 # h1 (post-IN1)
        pltpu.VMEM((N, Cout, HW), jnp.float32),                 # skip / residual
        pltpu.VMEM((N, Cout, HW) if cache_h2 else (1, 8, 128),  # h2 (post-IN2)
                   jnp.float32),
        pltpu.VMEM((Cout, 1), jnp.float32),                     # BN1 sum of squares
        pltpu.VMEM((Cout, 1), jnp.float32),                     # BN2 sum of squares
    ]

    flops = (2 * N * HW * Cout * (Cin + Cout + (Cin if pre else 0))
             + 12 * N * Cout * HW)
    cost = pl.CostEstimate(
        flops=int(flops),
        transcendentals=int(2 * N * Cout + 2 * Cout),   # rsqrt per IN / BN
        bytes_accessed=int(x3d.size * f32 + N * Cout * HW * f32 + param_bytes))

    out3d = pl.pallas_call(
        kernel,
        out_shape=jax.ShapeDtypeStruct((N, Cout, HW), jnp.float32),
        grid=(3, nb),
        in_specs=[
            pl.BlockSpec((tb, Cin, HW), x_map),        # x
            pl.BlockSpec((Cout, Cin), const_map),      # w1
            pl.BlockSpec((Cout, Cout), const_map),     # w2
            pl.BlockSpec((Cout, 1), const_map),        # g1
            pl.BlockSpec((Cout, 1), const_map),        # be1
            pl.BlockSpec((Cout, 1), const_map),        # g2
            pl.BlockSpec((Cout, 1), const_map),        # be2
            pl.BlockSpec((Cout, Cin), const_map),      # wr
            pl.BlockSpec((Cout, 1), const_map),        # br
        ],
        out_specs=pl.BlockSpec((tb, Cout, HW), out_map),
        scratch_shapes=scratch,
        compiler_params=pltpu.CompilerParams(
            dimension_semantics=("arbitrary", "arbitrary"),
            vmem_limit_bytes=int(vmem_limit)),
        cost_estimate=cost,
    )(x3d, params["w1"], params["w2"], params["g1"], params["be1"],
      params["g2"], params["be2"], params["wr"], params["br"])

    return out3d.reshape(N, Cout, H, W)


# ------------------------- pure-JAX reference ---------------------------------
def resnet_block_reference(x, p, *, pre):
    HIGH = jax.lax.Precision.HIGHEST

    def conv1x1(h, w, b):  # h: NCHW, w: (Cout, Cin), b: (Cout, 1)
        return (jnp.einsum("nchw,oc->nohw", h, w, precision=HIGH)
                + b[:, 0][None, :, None, None])

    def inorm(h):
        m = h.mean(axis=(2, 3), keepdims=True)
        v = ((h - m) ** 2).mean(axis=(2, 3), keepdims=True)
        return (h - m) / jnp.sqrt(v + EPS)

    def bnorm(h, g, be):
        m = h.mean(axis=(0, 2, 3), keepdims=True)
        v = ((h - m) ** 2).mean(axis=(0, 2, 3), keepdims=True)
        return (g[:, 0][None, :, None, None] * (h - m) / jnp.sqrt(v + EPS)
                + be[:, 0][None, :, None, None])

    h = conv1x1(x, p["w1"], p["b1"])
    h = inorm(h)
    h = bnorm(h, p["g1"], p["be1"])
    h = jnp.maximum(h, 0.0)
    h = conv1x1(h, p["w2"], p["b2"])
    h = inorm(h)
    h = bnorm(h, p["g2"], p["be2"])
    x1 = conv1x1(x, p["wr"], p["br"]) if pre else x
    return jnp.maximum(h + x1, 0.0)


# ------------------------------ parameters ------------------------------------
def init_params(key, cin, cout):
    ks = jax.random.split(key, 6)
    f32 = jnp.float32
    return {
        # conv weights in torch orientation: (Cout, Cin)
        "w1": 0.3 * jax.random.normal(ks[0], (cout, cin), f32),
        "b1": 0.1 * jax.random.normal(ks[1], (cout, 1), f32),
        "w2": 0.3 * jax.random.normal(ks[2], (cout, cout), f32),
        "b2": 0.1 * jax.random.normal(ks[3], (cout, 1), f32),
        "wr": 0.3 * jax.random.normal(ks[4], (cout, cin), f32),
        "br": 0.1 * jax.random.normal(ks[5], (cout, 1), f32),
        # BatchNorm affine params at PyTorch init values
        "g1": jnp.ones((cout, 1), f32), "be1": jnp.zeros((cout, 1), f32),
        "g2": jnp.ones((cout, 1), f32), "be2": jnp.zeros((cout, 1), f32),
    }


if __name__ == "__main__":
    N, C, H, W = 2, 4, 16, 16  # inchannel == outchannel == 4
    key = jax.random.PRNGKey(0)
    kx, kp = jax.random.split(key)
    x = jax.random.normal(kx, (N, C, H, W), jnp.float32)
    params = init_params(kp, C, C)

    for pre in (False, True):
        out = jax.block_until_ready(resnet_block(x, params, pre=pre))
        ref = jax.block_until_ready(resnet_block_reference(x, params, pre=pre))
        assert out.shape == (N, C, H, W)
        err = float(jnp.max(jnp.abs(out - ref)))
        assert jnp.allclose(out, ref, rtol=1e-4, atol=1e-4), (
            f"mismatch (pre={pre}): max abs err {err}")

    print("KERNEL_OK")
</pallas_src>

<mosaic_0001>
module attributes {stable_mosaic.version = 11 : i64} {
  func.func @resnet_block_kernel(%arg0: i32, %arg1: i32, %arg2: memref<2x4x256xf32, #tpu.memory_space<vmem>>, %arg3: memref<4x4xf32, #tpu.memory_space<vmem>>, %arg4: memref<4x4xf32, #tpu.memory_space<vmem>>, %arg5: memref<4x1xf32, #tpu.memory_space<vmem>>, %arg6: memref<4x1xf32, #tpu.memory_space<vmem>>, %arg7: memref<4x1xf32, #tpu.memory_space<vmem>>, %arg8: memref<4x1xf32, #tpu.memory_space<vmem>>, %arg9: memref<4x4xf32, #tpu.memory_space<vmem>>, %arg10: memref<4x1xf32, #tpu.memory_space<vmem>>, %arg11: memref<2x4x256xf32, #tpu.memory_space<vmem>>, %arg12: memref<2x4x256xf32, #tpu.memory_space<vmem>>, %arg13: memref<2x4x256xf32, #tpu.memory_space<vmem>>, %arg14: memref<2x4x256xf32, #tpu.memory_space<vmem>>, %arg15: memref<4x1xf32, #tpu.memory_space<vmem>>, %arg16: memref<4x1xf32, #tpu.memory_space<vmem>>) attributes {dimension_semantics = [#tpu.dimension_semantics<arbitrary>, #tpu.dimension_semantics<arbitrary>], iteration_bounds = array<i64: 3, 1>, scalar_prefetch = 0 : i64, scratch_operands = 5 : i64, tpu.core_type = #tpu.core_type<tc>, window_params = [{transform_indices = @transform_0, window_bounds = array<i64: 2, 4, 256>}, {pipeline_mode = #tpu.pipeline_mode<synchronous>, transform_indices = @transform_1, window_bounds = array<i64: 4, 4>}, {pipeline_mode = #tpu.pipeline_mode<synchronous>, transform_indices = @transform_2, window_bounds = array<i64: 4, 4>}, {pipeline_mode = #tpu.pipeline_mode<synchronous>, transform_indices = @transform_3, window_bounds = array<i64: 4, 1>}, {pipeline_mode = #tpu.pipeline_mode<synchronous>, transform_indices = @transform_4, window_bounds = array<i64: 4, 1>}, {pipeline_mode = #tpu.pipeline_mode<synchronous>, transform_indices = @transform_5, window_bounds = array<i64: 4, 1>}, {pipeline_mode = #tpu.pipeline_mode<synchronous>, transform_indices = @transform_6, window_bounds = array<i64: 4, 1>}, {pipeline_mode = #tpu.pipeline_mode<synchronous>, transform_indices = @transform_7, window_bounds = array<i64: 4, 4>}, {pipeline_mode = #tpu.pipeline_mode<synchronous>, transform_indices = @transform_8, window_bounds = array<i64: 4, 1>}, {transform_indices = @transform_9, window_bounds = array<i64: 2, 4, 256>}]} {
    %c2_i32 = arith.constant 2 : i32
    %0 = arith.muli %arg1, %c2_i32 : i32
    %1 = tpu.assume_multiple %0, 2 : i32
    %c0_i32 = arith.constant 0 : i32
    %2 = arith.cmpi eq, %arg0, %c0_i32 : i32
    %3 = arith.extui %2 : i1 to i32
    %c0_i32_0 = arith.constant 0 : i32
    %4 = arith.cmpi ne, %3, %c0_i32_0 : i32
    scf.if %4 {
      %c0_i32_4 = arith.constant 0 : i32
      %11 = arith.cmpi eq, %arg1, %c0_i32_4 : i32
      %12 = arith.extui %11 : i1 to i32
      %c0_i32_5 = arith.constant 0 : i32
      %13 = arith.cmpi ne, %12, %c0_i32_5 : i32
      scf.if %13 {
        %cst_25 = arith.constant 0.000000e+00 : f32
        %72 = vector.broadcast %cst_25 : f32 to vector<4x1xf32>
        %c0_26 = arith.constant 0 : index
        %c0_27 = arith.constant 0 : index
        %73 = vector.load %arg15[%c0_26, %c0_27] : memref<4x1xf32, #tpu.memory_space<vmem>>, vector<4x1xf32>
        tpu.vector_store %arg15[%c0_26, %c0_27], %72 {strides = array<i32>} : memref<4x1xf32, #tpu.memory_space<vmem>>, vector<4x1xf32>,
        %cst_28 = arith.constant 0.000000e+00 : f32
        %74 = vector.broadcast %cst_28 : f32 to vector<4x1xf32>
        %c0_29 = arith.constant 0 : index
        %c0_30 = arith.constant 0 : index
        %75 = vector.load %arg16[%c0_29, %c0_30] : memref<4x1xf32, #tpu.memory_space<vmem>>, vector<4x1xf32>
        tpu.vector_store %arg16[%c0_29, %c0_30], %74 {strides = array<i32>} : memref<4x1xf32, #tpu.memory_space<vmem>>, vector<4x1xf32>,
      } else {
      }
      %c0 = arith.constant 0 : index
      %c0_6 = arith.constant 0 : index
      %c0_7 = arith.constant 0 : index
      %14 = vector.load %arg2[%c0, %c0_6, %c0_7] : memref<2x4x256xf32, #tpu.memory_space<vmem>>, vector<2x4x256xf32>
      %c0_8 = arith.constant 0 : index
      %c0_9 = arith.constant 0 : index
      %15 = vector.load %arg3[%c0_8, %c0_9] : memref<4x4xf32, #tpu.memory_space<vmem>>, vector<4x4xf32>
      %16 = vector.extract_strided_slice %15 {offsets = [0, 0], sizes = [4, 1], strides = [1, 1]} : vector<4x4xf32> to vector<4x1xf32>
      %17 = vector.shape_cast %16 : vector<4x1xf32> to vector<1x4x1xf32>
      %18 = vector.extract_strided_slice %14 {offsets = [0, 0, 0], sizes = [2, 1, 256], strides = [1, 1, 1]} : vector<2x4x256xf32> to vector<2x1x256xf32>
      %19 = vector.broadcast %17 : vector<1x4x1xf32> to vector<2x4x256xf32>
      %20 = vector.broadcast %18 : vector<2x1x256xf32> to vector<2x4x256xf32>
      %21 = arith.mulf %19, %20 : vector<2x4x256xf32>
      %22 = vector.extract_strided_slice %15 {offsets = [0, 1], sizes = [4, 1], strides = [1, 1]} : vector<4x4xf32> to vector<4x1xf32>
      %23 = vector.shape_cast %22 : vector<4x1xf32> to vector<1x4x1xf32>
      %24 = vector.extract_strided_slice %14 {offsets = [0, 1, 0], sizes = [2, 1, 256], strides = [1, 1, 1]} : vector<2x4x256xf32> to vector<2x1x256xf32>
      %25 = vector.broadcast %23 : vector<1x4x1xf32> to vector<2x4x256xf32>
      %26 = vector.broadcast %24 : vector<2x1x256xf32> to vector<2x4x256xf32>
      %27 = arith.mulf %25, %26 : vector<2x4x256xf32>
      %28 = arith.addf %21, %27 : vector<2x4x256xf32>
      %29 = vector.extract_strided_slice %15 {offsets = [0, 2], sizes = [4, 1], strides = [1, 1]} : vector<4x4xf32> to vector<4x1xf32>
      %30 = vector.shape_cast %29 : vector<4x1xf32> to vector<1x4x1xf32>
      %31 = vector.extract_strided_slice %14 {offsets = [0, 2, 0], sizes = [2, 1, 256], strides = [1, 1, 1]} : vector<2x4x256xf32> to vector<2x1x256xf32>
      %32 = vector.broadcast %30 : vector<1x4x1xf32> to vector<2x4x256xf32>
      %33 = vector.broadcast %31 : vector<2x1x256xf32> to vector<2x4x256xf32>
      %34 = arith.mulf %32, %33 : vector<2x4x256xf32>
      %35 = arith.addf %28, %34 : vector<2x4x256xf32>
      %36 = vector.extract_strided_slice %15 {offsets = [0, 3], sizes = [4, 1], strides = [1, 1]} : vector<4x4xf32> to vector<4x1xf32>
      %37 = vector.shape_cast %36 : vector<4x1xf32> to vector<1x4x1xf32>
      %38 = vector.extract_strided_slice %14 {offsets = [0, 3, 0], sizes = [2, 1, 256], strides = [1, 1, 1]} : vector<2x4x256xf32> to vector<2x1x256xf32>
      %39 = vector.broadcast %37 : vector<1x4x1xf32> to vector<2x4x256xf32>
      %40 = vector.broadcast %38 : vector<2x1x256xf32> to vector<2x4x256xf32>
      %41 = arith.mulf %39, %40 : vector<2x4x256xf32>
      %42 = arith.addf %35, %41 : vector<2x4x256xf32>
      %cst = arith.constant dense<0.000000e+00> : vector<2x4xf32>
      %43 = vector.multi_reduction <add>, %42, %cst [2] : vector<2x4x256xf32> to vector<2x4xf32>
      %44 = vector.shape_cast %43 : vector<2x4xf32> to vector<2x4x1xf32>
      %cst_10 = arith.constant 2.560000e+02 : f32
      %45 = vector.broadcast %cst_10 : f32 to vector<2x4x1xf32>
      %46 = arith.divf %44, %45 : vector<2x4x1xf32>
      %47 = vector.broadcast %46 : vector<2x4x1xf32> to vector<2x4x256xf32>
      %48 = arith.subf %42, %47 : vector<2x4x256xf32>
      %49 = arith.mulf %48, %48 : vector<2x4x256xf32>
      %cst_11 = arith.constant dense<0.000000e+00> : vector<2x4xf32>
      %50 = vector.multi_reduction <add>, %49, %cst_11 [2] : vector<2x4x256xf32> to vector<2x4xf32>
      %51 = vector.shape_cast %50 : vector<2x4xf32> to vector<2x4x1xf32>
      %cst_12 = arith.constant 2.560000e+02 : f32
      %52 = vector.broadcast %cst_12 : f32 to vector<2x4x1xf32>
      %53 = arith.divf %51, %52 : vector<2x4x1xf32>
      %cst_13 = arith.constant 9.99999974E-6 : f32
      %54 = vector.broadcast %cst_13 : f32 to vector<2x4x1xf32>
      %55 = arith.addf %53, %54 : vector<2x4x1xf32>
      %56 = math.rsqrt %55 : vector<2x4x1xf32>
      %57 = vector.broadcast %56 : vector<2x4x1xf32> to vector<2x4x256xf32>
      %58 = arith.mulf %48, %57 : vector<2x4x256xf32>
      %59 = arith.index_cast %1 : i32 to index
      %c0_14 = arith.constant 0 : index
      %c0_15 = arith.constant 0 : index
      %60 = vector.load %arg12[%59, %c0_14, %c0_15] : memref<2x4x256xf32, #tpu.memory_space<vmem>>, vector<2x4x256xf32>
      tpu.vector_store %arg12[%59, %c0_14, %c0_15], %58 {strides = array<i32>} : memref<2x4x256xf32, #tpu.memory_space<vmem>>, vector<2x4x256xf32>,
      %61 = arith.index_cast %1 : i32 to index
      %c0_16 = arith.constant 0 : index
      %c0_17 = arith.constant 0 : index
      %62 = vector.load %arg13[%61, %c0_16, %c0_17] : memref<2x4x256xf32, #tpu.memory_space<vmem>>, vector<2x4x256xf32>
      tpu.vector_store %arg13[%61, %c0_16, %c0_17], %14 {strides = array<i32>} : memref<2x4x256xf32, #tpu.memory_space<vmem>>, vector<2x4x256xf32>,
      %c0_18 = arith.constant 0 : index
      %c0_19 = arith.constant 0 : index
      %63 = vector.load %arg15[%c0_18, %c0_19] : memref<4x1xf32, #tpu.memory_space<vmem>>, vector<4x1xf32>
      %cst_20 = arith.constant 2.560000e+02 : f32
      %64 = vector.broadcast %cst_20 : f32 to vector<2x4x1xf32>
      %65 = arith.mulf %64, %53 : vector<2x4x1xf32>
      %cst_21 = arith.constant 9.99999974E-6 : f32
      %66 = vector.broadcast %cst_21 : f32 to vector<2x4x1xf32>
      %67 = arith.addf %53, %66 : vector<2x4x1xf32>
      %68 = arith.divf %65, %67 : vector<2x4x1xf32>
      %cst_22 = arith.constant dense<0.000000e+00> : vector<4x1xf32>
      %69 = vector.multi_reduction <add>, %68, %cst_22 [0] : vector<2x4x1xf32> to vector<4x1xf32>
      %70 = arith.addf %63, %69 : vector<4x1xf32>
      %c0_23 = arith.constant 0 : index
      %c0_24 = arith.constant 0 : index
      %71 = vector.load %arg15[%c0_23, %c0_24] : memref<4x1xf32, #tpu.memory_space<vmem>>, vector<4x1xf32>
      tpu.vector_store %arg15[%c0_23, %c0_24], %70 {strides = array<i32>} : memref<4x1xf32, #tpu.memory_space<vmem>>, vector<4x1xf32>,
    } else {
    }
    %c1_i32 = arith.constant 1 : i32
    %5 = arith.cmpi eq, %arg0, %c1_i32 : i32
    %6 = arith.extui %5 : i1 to i32
    %c0_i32_1 = arith.constant 0 : i32
    %7 = arith.cmpi ne, %6, %c0_i32_1 : i32
    scf.if %7 {
      %11 = arith.index_cast %1 : i32 to index
      %c0 = arith.constant 0 : index
      %c0_4 = arith.constant 0 : index
      %12 = vector.load %arg12[%11, %c0, %c0_4] : memref<2x4x256xf32, #tpu.memory_space<vmem>>, vector<2x4x256xf32>
      %c0_5 = arith.constant 0 : index
      %c0_6 = arith.constant 0 : index
      %13 = vector.load %arg15[%c0_5, %c0_6] : memref<4x1xf32, #tpu.memory_space<vmem>>, vector<4x1xf32>
      %cst = arith.constant 0.001953125 : f32
      %14 = vector.broadcast %cst : f32 to vector<4x1xf32>
      %15 = arith.mulf %13, %14 : vector<4x1xf32>
      %c0_7 = arith.constant 0 : index
      %c0_8 = arith.constant 0 : index
      %16 = vector.load %arg5[%c0_7, %c0_8] : memref<4x1xf32, #tpu.memory_space<vmem>>, vector<4x1xf32>
      %cst_9 = arith.constant 9.99999974E-6 : f32
      %17 = vector.broadcast %cst_9 : f32 to vector<4x1xf32>
      %18 = arith.addf %15, %17 : vector<4x1xf32>
      %19 = math.rsqrt %18 : vector<4x1xf32>
      %20 = arith.mulf %16, %19 : vector<4x1xf32>
      %c0_10 = arith.constant 0 : index
      %c0_11 = arith.constant 0 : index
      %21 = vector.load %arg6[%c0_10, %c0_11] : memref<4x1xf32, #tpu.memory_space<vmem>>, vector<4x1xf32>
      %22 = vector.shape_cast %20 : vector<4x1xf32> to vector<1x4x1xf32>
      %23 = vector.shape_cast %21 : vector<4x1xf32> to vector<1x4x1xf32>
      %24 = vector.broadcast %22 : vector<1x4x1xf32> to vector<2x4x256xf32>
      %25 = arith.mulf %12, %24 : vector<2x4x256xf32>
      %26 = vector.broadcast %23 : vector<1x4x1xf32> to vector<2x4x256xf32>
      %27 = arith.addf %25, %26 : vector<2x4x256xf32>
      %cst_12 = arith.constant 0.000000e+00 : f32
      %28 = vector.broadcast %cst_12 : f32 to vector<2x4x256xf32>
      %29 = arith.maximumf %27, %28 : vector<2x4x256xf32>
      %c0_13 = arith.constant 0 : index
      %c0_14 = arith.constant 0 : index
      %30 = vector.load %arg4[%c0_13, %c0_14] : memref<4x4xf32, #tpu.memory_space<vmem>>, vector<4x4xf32>
      %31 = vector.extract_strided_slice %30 {offsets = [0, 0], sizes = [4, 1], strides = [1, 1]} : vector<4x4xf32> to vector<4x1xf32>
      %32 = vector.shape_cast %31 : vector<4x1xf32> to vector<1x4x1xf32>
      %33 = vector.extract_strided_slice %29 {offsets = [0, 0, 0], sizes = [2, 1, 256], strides = [1, 1, 1]} : vector<2x4x256xf32> to vector<2x1x256xf32>
      %34 = vector.broadcast %32 : vector<1x4x1xf32> to vector<2x4x256xf32>
      %35 = vector.broadcast %33 : vector<2x1x256xf32> to vector<2x4x256xf32>
      %36 = arith.mulf %34, %35 : vector<2x4x256xf32>
      %37 = vector.extract_strided_slice %30 {offsets = [0, 1], sizes = [4, 1], strides = [1, 1]} : vector<4x4xf32> to vector<4x1xf32>
      %38 = vector.shape_cast %37 : vector<4x1xf32> to vector<1x4x1xf32>
      %39 = vector.extract_strided_slice %29 {offsets = [0, 1, 0], sizes = [2, 1, 256], strides = [1, 1, 1]} : vector<2x4x256xf32> to vector<2x1x256xf32>
      %40 = vector.broadcast %38 : vector<1x4x1xf32> to vector<2x4x256xf32>
      %41 = vector.broadcast %39 : vector<2x1x256xf32> to vector<2x4x256xf32>
      %42 = arith.mulf %40, %41 : vector<2x4x256xf32>
      %43 = arith.addf %36, %42 : vector<2x4x256xf32>
      %44 = vector.extract_strided_slice %30 {offsets = [0, 2], sizes = [4, 1], strides = [1, 1]} : vector<4x4xf32> to vector<4x1xf32>
      %45 = vector.shape_cast %44 : vector<4x1xf32> to vector<1x4x1xf32>
      %46 = vector.extract_strided_slice %29 {offsets = [0, 2, 0], sizes = [2, 1, 256], strides = [1, 1, 1]} : vector<2x4x256xf32> to vector<2x1x256xf32>
      %47 = vector.broadcast %45 : vector<1x4x1xf32> to vector<2x4x256xf32>
      %48 = vector.broadcast %46 : vector<2x1x256xf32> to vector<2x4x256xf32>
      %49 = arith.mulf %47, %48 : vector<2x4x256xf32>
      %50 = arith.addf %43, %49 : vector<2x4x256xf32>
      %51 = vector.extract_strided_slice %30 {offsets = [0, 3], sizes = [4, 1], strides = [1, 1]} : vector<4x4xf32> to vector<4x1xf32>
      %52 = vector.shape_cast %51 : vector<4x1xf32> to vector<1x4x1xf32>
      %53 = vector.extract_strided_slice %29 {offsets = [0, 3, 0], sizes = [2, 1, 256], strides = [1, 1, 1]} : vector<2x4x256xf32> to vector<2x1x256xf32>
      %54 = vector.broadcast %52 : vector<1x4x1xf32> to vector<2x4x256xf32>
      %55 = vector.broadcast %53 : vector<2x1x256xf32> to vector<2x4x256xf32>
      %56 = arith.mulf %54, %55 : vector<2x4x256xf32>
      %57 = arith.addf %50, %56 : vector<2x4x256xf32>
      %cst_15 = arith.constant dense<0.000000e+00> : vector<2x4xf32>
      %58 = vector.multi_reduction <add>, %57, %cst_15 [2] : vector<2x4x256xf32> to vector<2x4xf32>
      %59 = vector.shape_cast %58 : vector<2x4xf32> to vector<2x4x1xf32>
      %cst_16 = arith.constant 2.560000e+02 : f32
      %60 = vector.broadcast %cst_16 : f32 to vector<2x4x1xf32>
      %61 = arith.divf %59, %60 : vector<2x4x1xf32>
      %62 = vector.broadcast %61 : vector<2x4x1xf32> to vector<2x4x256xf32>
      %63 = arith.subf %57, %62 : vector<2x4x256xf32>
      %64 = arith.mulf %63, %63 : vector<2x4x256xf32>
      %cst_17 = arith.constant dense<0.000000e+00> : vector<2x4xf32>
      %65 = vector.multi_reduction <add>, %64, %cst_17 [2] : vector<2x4x256xf32> to vector<2x4xf32>
      %66 = vector.shape_cast %65 : vector<2x4xf32> to vector<2x4x1xf32>
      %cst_18 = arith.constant 2.560000e+02 : f32
      %67 = vector.broadcast %cst_18 : f32 to vector<2x4x1xf32>
      %68 = arith.divf %66, %67 : vector<2x4x1xf32>
      %cst_19 = arith.constant 9.99999974E-6 : f32
      %69 = vector.broadcast %cst_19 : f32 to vector<2x4x1xf32>
      %70 = arith.addf %68, %69 : vector<2x4x1xf32>
      %71 = math.rsqrt %70 : vector<2x4x1xf32>
      %72 = vector.broadcast %71 : vector<2x4x1xf32> to vector<2x4x256xf32>
      %73 = arith.mulf %63, %72 : vector<2x4x256xf32>
      %74 = arith.index_cast %1 : i32 to index
      %c0_20 = arith.constant 0 : index
      %c0_21 = arith.constant 0 : index
      %75 = vector.load %arg14[%74, %c0_20, %c0_21] : memref<2x4x256xf32, #tpu.memory_space<vmem>>, vector<2x4x256xf32>
      tpu.vector_store %arg14[%74, %c0_20, %c0_21], %73 {strides = array<i32>} : memref<2x4x256xf32, #tpu.memory_space<vmem>>, vector<2x4x256xf32>,
      %c0_22 = arith.constant 0 : index
      %c0_23 = arith.constant 0 : index
      %76 = vector.load %arg16[%c0_22, %c0_23] : memref<4x1xf32, #tpu.memory_space<vmem>>, vector<4x1xf32>
      %cst_24 = arith.constant 2.560000e+02 : f32
      %77 = vector.broadcast %cst_24 : f32 to vector<2x4x1xf32>
      %78 = arith.mulf %77, %68 : vector<2x4x1xf32>
      %cst_25 = arith.constant 9.99999974E-6 : f32
      %79 = vector.broadcast %cst_25 : f32 to vector<2x4x1xf32>
      %80 = arith.addf %68, %79 : vector<2x4x1xf32>
      %81 = arith.divf %78, %80 : vector<2x4x1xf32>
      %cst_26 = arith.constant dense<0.000000e+00> : vector<4x1xf32>
      %82 = vector.multi_reduction <add>, %81, %cst_26 [0] : vector<2x4x1xf32> to vector<4x1xf32>
      %83 = arith.addf %76, %82 : vector<4x1xf32>
      %c0_27 = arith.constant 0 : index
      %c0_28 = arith.constant 0 : index
      %84 = vector.load %arg16[%c0_27, %c0_28] : memref<4x1xf32, #tpu.memory_space<vmem>>, vector<4x1xf32>
      tpu.vector_store %arg16[%c0_27, %c0_28], %83 {strides = array<i32>} : memref<4x1xf32, #tpu.memory_space<vmem>>, vector<4x1xf32>,
    } else {
    }
    %c2_i32_2 = arith.constant 2 : i32
    %8 = arith.cmpi eq, %arg0, %c2_i32_2 : i32
    %9 = arith.extui %8 : i1 to i32
    %c0_i32_3 = arith.constant 0 : i32
    %10 = arith.cmpi ne, %9, %c0_i32_3 : i32
    scf.if %10 {
      %11 = arith.index_cast %1 : i32 to index
      %c0 = arith.constant 0 : index
      %c0_4 = arith.constant 0 : index
      %12 = vector.load %arg14[%11, %c0, %c0_4] : memref<2x4x256xf32, #tpu.memory_space<vmem>>, vector<2x4x256xf32>
      %c0_5 = arith.constant 0 : index
      %c0_6 = arith.constant 0 : index
      %13 = vector.load %arg16[%c0_5, %c0_6] : memref<4x1xf32, #tpu.memory_space<vmem>>, vector<4x1xf32>
      %cst = arith.constant 0.001953125 : f32
      %14 = vector.broadcast %cst : f32 to vector<4x1xf32>
      %15 = arith.mulf %13, %14 : vector<4x1xf32>
      %c0_7 = arith.constant 0 : index
      %c0_8 = arith.constant 0 : index
      %16 = vector.load %arg7[%c0_7, %c0_8] : memref<4x1xf32, #tpu.memory_space<vmem>>, vector<4x1xf32>
      %cst_9 = arith.constant 9.99999974E-6 : f32
      %17 = vector.broadcast %cst_9 : f32 to vector<4x1xf32>
      %18 = arith.addf %15, %17 : vector<4x1xf32>
      %19 = math.rsqrt %18 : vector<4x1xf32>
      %20 = arith.mulf %16, %19 : vector<4x1xf32>
      %c0_10 = arith.constant 0 : index
      %c0_11 = arith.constant 0 : index
      %21 = vector.load %arg8[%c0_10, %c0_11] : memref<4x1xf32, #tpu.memory_space<vmem>>, vector<4x1xf32>
      %22 = vector.shape_cast %20 : vector<4x1xf32> to vector<1x4x1xf32>
      %23 = vector.shape_cast %21 : vector<4x1xf32> to vector<1x4x1xf32>
      %24 = vector.broadcast %22 : vector<1x4x1xf32> to vector<2x4x256xf32>
      %25 = arith.mulf %12, %24 : vector<2x4x256xf32>
      %26 = vector.broadcast %23 : vector<1x4x1xf32> to vector<2x4x256xf32>
      %27 = arith.addf %25, %26 : vector<2x4x256xf32>
      %28 = arith.index_cast %1 : i32 to index
      %c0_12 = arith.constant 0 : index
      %c0_13 = arith.constant 0 : index
      %29 = vector.load %arg13[%28, %c0_12, %c0_13] : memref<2x4x256xf32, #tpu.memory_space<vmem>>, vector<2x4x256xf32>
      %30 = arith.addf %27, %29 : vector<2x4x256xf32>
      %cst_14 = arith.constant 0.000000e+00 : f32
      %31 = vector.broadcast %cst_14 : f32 to vector<2x4x256xf32>
      %32 = arith.maximumf %30, %31 : vector<2x4x256xf32>
      %c0_15 = arith.constant 0 : index
      %c0_16 = arith.constant 0 : index
      %c0_17 = arith.constant 0 : index
      %33 = vector.load %arg11[%c0_15, %c0_16, %c0_17] : memref<2x4x256xf32, #tpu.memory_space<vmem>>, vector<2x4x256xf32>
      tpu.vector_store %arg11[%c0_15, %c0_16, %c0_17], %32 {strides = array<i32>} : memref<2x4x256xf32, #tpu.memory_space<vmem>>, vector<2x4x256xf32>,
    } else {
    }
    return
  }
  func.func @transform_0(%arg0: i32, %arg1: i32) -> (i32, i32, i32) {
    %c0_i32 = arith.constant 0 : i32
    %0 = arith.cmpi eq, %arg0, %c0_i32 : i32
    %1 = arith.extui %0 : i1 to i32
    %2 = arith.muli %arg1, %1 : i32
    %c0_i32_0 = arith.constant 0 : i32
    %c0_i32_1 = arith.constant 0 : i32
    %c0_i32_2 = arith.constant 0 : i32
    return %2, %c0_i32_0, %c0_i32_1 : i32, i32, i32
  }
  func.func @transform_1(%arg0: i32, %arg1: i32) -> (i32, i32) {
    %c0_i32 = arith.constant 0 : i32
    %c0_i32_0 = arith.constant 0 : i32
    %c0_i32_1 = arith.constant 0 : i32
    return %c0_i32, %c0_i32_0 : i32, i32
  }
  func.func @transform_2(%arg0: i32, %arg1: i32) -> (i32, i32) {
    %c0_i32 = arith.constant 0 : i32
    %c0_i32_0 = arith.constant 0 : i32
    %c0_i32_1 = arith.constant 0 : i32
    return %c0_i32, %c0_i32_0 : i32, i32
  }
  func.func @transform_3(%arg0: i32, %arg1: i32) -> (i32, i32) {
    %c0_i32 = arith.constant 0 : i32
    %c0_i32_0 = arith.constant 0 : i32
    %c0_i32_1 = arith.constant 0 : i32
    return %c0_i32, %c0_i32_0 : i32, i32
  }
  func.func @transform_4(%arg0: i32, %arg1: i32) -> (i32, i32) {
    %c0_i32 = arith.constant 0 : i32
    %c0_i32_0 = arith.constant 0 : i32
    %c0_i32_1 = arith.constant 0 : i32
    return %c0_i32, %c0_i32_0 : i32, i32
  }
  func.func @transform_5(%arg0: i32, %arg1: i32) -> (i32, i32) {
    %c0_i32 = arith.constant 0 : i32
    %c0_i32_0 = arith.constant 0 : i32
    %c0_i32_1 = arith.constant 0 : i32
    return %c0_i32, %c0_i32_0 : i32, i32
  }
  func.func @transform_6(%arg0: i32, %arg1: i32) -> (i32, i32) {
    %c0_i32 = arith.constant 0 : i32
    %c0_i32_0 = arith.constant 0 : i32
    %c0_i32_1 = arith.constant 0 : i32
    return %c0_i32, %c0_i32_0 : i32, i32
  }
  func.func @transform_7(%arg0: i32, %arg1: i32) -> (i32, i32) {
    %c0_i32 = arith.constant 0 : i32
    %c0_i32_0 = arith.constant 0 : i32
    %c0_i32_1 = arith.constant 0 : i32
    return %c0_i32, %c0_i32_0 : i32, i32
  }
  func.func @transform_8(%arg0: i32, %arg1: i32) -> (i32, i32) {
    %c0_i32 = arith.constant 0 : i32
    %c0_i32_0 = arith.constant 0 : i32
    %c0_i32_1 = arith.constant 0 : i32
    return %c0_i32, %c0_i32_0 : i32, i32
  }
  func.func @transform_9(%arg0: i32, %arg1: i32) -> (i32, i32, i32) {
    %c2_i32 = arith.constant 2 : i32
    %0 = arith.cmpi eq, %arg0, %c2_i32 : i32
    %1 = arith.extui %0 : i1 to i32
    %2 = arith.muli %arg1, %1 : i32
    %c0_i32 = arith.constant 0 : i32
    %c0_i32_0 = arith.constant 0 : i32
    %c0_i32_1 = arith.constant 0 : i32
    return %2, %c0_i32, %c0_i32_0 : i32, i32, i32
  }
}

</mosaic_0001>

<llo_original>
// kernel: tpu_custom_call.1
$region0: #{tpu_custom_call.1}
  #allocation0 [shape = 'u32[]', space=smem, size = 0x4, offset = 0x4, fixed_abs, tag = 'smem constant byte address 0x4 - core index']
  #allocation1 [shape = 'u32[144,128]{1,0:T(1,128)}', space=vmem, size = 0x12000, scoped, tag = 'internal scratch']
  #allocation2 [shape = 'f32[2,4,256]{2,1,0:T(4,128)}', space=vmem, size = 0x2000, scoped, tag = 'scratch operand']
  #allocation3 [shape = 'f32[2,4,256]{2,1,0:T(4,128)}', space=vmem, size = 0x2000, scoped, tag = 'scratch operand']
  #allocation4 [shape = 'f32[2,4,256]{2,1,0:T(4,128)}', space=vmem, size = 0x2000, scoped, tag = 'scratch operand']
  #allocation5 [shape = 'f32[4,1]{1,0:T(4,128)}', space=vmem, size = 0x800, scoped, tag = 'scratch operand']
  #allocation6 [shape = 'f32[4,1]{1,0:T(4,128)}', space=vmem, size = 0x800, scoped, tag = 'scratch operand']
  %s0 = inlined_call_operand.vmem [shape: f32[2,4,256], index: 0, kind: input, shape index: {}]
  %s1 = inlined_call_operand.vmem [shape: f32[4,4], index: 1, kind: input, shape index: {}]
  %s2 = inlined_call_operand.vmem [shape: f32[4,4], index: 2, kind: input, shape index: {}]
  %s3 = inlined_call_operand.vmem [shape: f32[4,1], index: 3, kind: input, shape index: {}]
  %s4 = inlined_call_operand.vmem [shape: f32[4,1], index: 4, kind: input, shape index: {}]
  %s5 = inlined_call_operand.vmem [shape: f32[4,1], index: 5, kind: input, shape index: {}]
  %s6 = inlined_call_operand.vmem [shape: f32[4,1], index: 6, kind: input, shape index: {}]
  %s7 = inlined_call_operand.vmem [shape: f32[4,4], index: 7, kind: input, shape index: {}]
  %s8 = inlined_call_operand.vmem [shape: f32[4,1], index: 8, kind: input, shape index: {}]
  %s9 = inlined_call_operand.hbm [shape: f32[2,4,256], index: 9, kind: output, shape index: {}]
  %s10 = sld [smem:[#allocation0]]
  $region85: #{tpu_custom_call.1} parent=0
    _
  %s12 = ssub.s32 1, %s10
  %s13 = scalar_select 0, %s12, %s10
  $region1: #{tpu_custom_call.1} parent=0
    #allocation7 [shape = 'u8[16384]{0}', space=vmem, size = 0x4000, scoped, tag = 'output window, operand 0']
    #allocation8 [shape = 's32[2]{0}', space=sflag, size = 0x8, scoped, tag = 'scoped memory for tpu_custom_call.1']
    %14 = vsyncpa [#allocation8], 0
    %s15 = scalar_lea.sflag [#allocation8], 1
    %16 = vsyncpa %s15, 0
    loop: start=0, step=1, limit=5
    $region2: #{tpu_custom_call.1} parent=1 // loop_pre_header
      _
    $region3: #{tpu_custom_call.1} parent=1 // loop_header
      %s18 = sphi 0, %s22
      %p19 = scmp.ge.s32.totalorder %s18, 5
      %s25 = sphi 0, %s37
      %s26 = sphi 0, %s33
      %s27 = sphi 0, %s25
      %s28 = sphi 0, %s26
      %s29 = sphi 0, %s27
      %s30 = sphi 0, %s28
      %s46 = sphi 0, %s48
      %s49 = sphi 0, %s46
      %s50 = sphi 0, %s49
      %s66 = sphi 0, %s50
      %s70 = sphi 0, %s70
      %s72 = sphi 0, %s70
      %s73 = sphi 0, %s72
      %s87 = sphi 0, %s73
      %s91 = sphi 0, %s91
      %s93 = sphi 0, %s91
      %s94 = sphi 0, %s93
      %s108 = sphi 0, %s94
      %s112 = sphi 0, %s112
      %s114 = sphi 0, %s112
      %s115 = sphi 0, %s114
      %s129 = sphi 0, %s115
      %s133 = sphi 0, %s133
      %s135 = sphi 0, %s133
      %s136 = sphi 0, %s135
      %s150 = sphi 0, %s136
      %s154 = sphi 0, %s154
      %s156 = sphi 0, %s154
      %s157 = sphi 0, %s156
      %s171 = sphi 0, %s157
      %s175 = sphi 0, %s175
      %s177 = sphi 0, %s175
      %s178 = sphi 0, %s177
      %s192 = sphi 0, %s178
      %s196 = sphi 0, %s196
      %s198 = sphi 0, %s196
      %s199 = sphi 0, %s198
      %s213 = sphi 0, %s199
      %s217 = sphi 0, %s217
      %s219 = sphi 0, %s217
      %s220 = sphi 0, %s219
      %s234 = sphi 0, %s220
      %s246 = sphi 0, %s248
      %s249 = sphi 0, %s246
      %s250 = sphi 0, %s249
      %s266 = sphi 0, %s250
    $region4: #{tpu_custom_call.1} parent=1 // loop_header_branch
      %21 = sbr.rel (%p19) target = $region8
    $region5: #{tpu_custom_call.1} parent=1 // loop_body
      %s23 = ssub.s32 %s18, 1
      %s24 = ssub.s32 %s18, 2
      %s31 = sadd.s32 1, %s26
      %p32 = scmp.ge.s32.totalorder %s31, 1
      %s33 = scalar_select %p32, 0, %s31
      %s34 = sadd.s32 1, %s25
      %s35 = scalar_select %p32, %s34, %s25
      %p36 = scmp.ge.s32.totalorder %s35, 3
      %s37 = scalar_select %p36, 0, %s35
      %p38 = scmp.eq.s32.totalorder %s25, 0
      %s39 = scalar_select %p38, 1, 0
      %s40 = smul.u32 %s26, %s39
      %p41 = scmp.eq.s32.totalorder %s37, 0
      %s42 = scalar_select %p41, 1, 0
      %s43 = smul.u32 %s33, %s42
      %s44 = ssub.s32 %s40, %s43
      %p45 = scmp.eq.s32.totalorder %s44, 0
      %s47 = sadd.s32 %s46, 1
      %s48 = scalar_select %p45, %s46, %s47
      %p51 = pneg %p45
      %p52 = scmp.eq.s32.totalorder %s18, 2
      %p53 = por %p51, %p52
      %p54 = scmp.ne.s32.totalorder %s46, %s49
      %p55 = scmp.eq.s32.totalorder %s18, 0
      %p56 = por %p54, %p55
      %p57 = scmp.ne.s32.totalorder %s46, %s49
      %p58 = scmp.eq.s32.totalorder %s23, 2
      %p59 = por %p57, %p58
      %p60 = scmp.ne.s32.totalorder %s49, %s50
      %p61 = scmp.eq.s32.totalorder %s23, 0
      %p62 = por %p60, %p61
      %p63 = scmp.ne.s32.totalorder %s49, %s50
      %p64 = scmp.eq.s32.totalorder %s24, 2
      %p65 = por %p63, %p64
      %p67 = scmp.ne.s32.totalorder %s50, %s66
      %p68 = scmp.eq.s32.totalorder %s24, 0
      %p69 = por %p67, %p68
      %s71 = sadd.s32 %s70, 1
      %p74 = scmp.eq.s32.totalorder %s18, 2
      %p75 = scmp.ne.s32.totalorder %s70, %s72
      %p76 = scmp.eq.s32.totalorder %s18, 0
      %p77 = por %p75, %p76
      %p78 = scmp.ne.s32.totalorder %s70, %s72
      %p79 = scmp.eq.s32.totalorder %s23, 2
      %p80 = por %p78, %p79
      %p81 = scmp.ne.s32.totalorder %s72, %s73
      %p82 = scmp.eq.s32.totalorder %s23, 0
      %p83 = por %p81, %p82
      %p84 = scmp.ne.s32.totalorder %s72, %s73
      %p85 = scmp.eq.s32.totalorder %s24, 2
      %p86 = por %p84, %p85
      %p88 = scmp.ne.s32.totalorder %s73, %s87
      %p89 = scmp.eq.s32.totalorder %s24, 0
      %p90 = por %p88, %p89
      %s92 = sadd.s32 %s91, 1
      %p95 = scmp.eq.s32.totalorder %s18, 2
      %p96 = scmp.ne.s32.totalorder %s91, %s93
      %p97 = scmp.eq.s32.totalorder %s18, 0
      %p98 = por %p96, %p97
      %p99 = scmp.ne.s32.totalorder %s91, %s93
      %p100 = scmp.eq.s32.totalorder %s23, 2
      %p101 = por %p99, %p100
      %p102 = scmp.ne.s32.totalorder %s93, %s94
      %p103 = scmp.eq.s32.totalorder %s23, 0
      %p104 = por %p102, %p103
      %p105 = scmp.ne.s32.totalorder %s93, %s94
      %p106 = scmp.eq.s32.totalorder %s24, 2
      %p107 = por %p105, %p106
      %p109 = scmp.ne.s32.totalorder %s94, %s108
      %p110 = scmp.eq.s32.totalorder %s24, 0
      %p111 = por %p109, %p110
      %s113 = sadd.s32 %s112, 1
      %p116 = scmp.eq.s32.totalorder %s18, 2
      %p117 = scmp.ne.s32.totalorder %s112, %s114
      %p118 = scmp.eq.s32.totalorder %s18, 0
      %p119 = por %p117, %p118
      %p120 = scmp.ne.s32.totalorder %s112, %s114
      %p121 = scmp.eq.s32.totalorder %s23, 2
      %p122 = por %p120, %p121
      %p123 = scmp.ne.s32.totalorder %s114, %s115
      %p124 = scmp.eq.s32.totalorder %s23, 0
      %p125 = por %p123, %p124
      %p126 = scmp.ne.s32.totalorder %s114, %s115
      %p127 = scmp.eq.s32.totalorder %s24, 2
      %p128 = por %p126, %p127
      %p130 = scmp.ne.s32.totalorder %s115, %s129
      %p131 = scmp.eq.s32.totalorder %s24, 0
      %p132 = por %p130, %p131
      %s134 = sadd.s32 %s133, 1
      %p137 = scmp.eq.s32.totalorder %s18, 2
      %p138 = scmp.ne.s32.totalorder %s133, %s135
      %p139 = scmp.eq.s32.totalorder %s18, 0
      %p140 = por %p138, %p139
      %p141 = scmp.ne.s32.totalorder %s133, %s135
      %p142 = scmp.eq.s32.totalorder %s23, 2
      %p143 = por %p141, %p142
      %p144 = scmp.ne.s32.totalorder %s135, %s136
      %p145 = scmp.eq.s32.totalorder %s23, 0
      %p146 = por %p144, %p145
      %p147 = scmp.ne.s32.totalorder %s135, %s136
      %p148 = scmp.eq.s32.totalorder %s24, 2
      %p149 = por %p147, %p148
      %p151 = scmp.ne.s32.totalorder %s136, %s150
      %p152 = scmp.eq.s32.totalorder %s24, 0
      %p153 = por %p151, %p152
      %s155 = sadd.s32 %s154, 1
      %p158 = scmp.eq.s32.totalorder %s18, 2
      %p159 = scmp.ne.s32.totalorder %s154, %s156
      %p160 = scmp.eq.s32.totalorder %s18, 0
      %p161 = por %p159, %p160
      %p162 = scmp.ne.s32.totalorder %s154, %s156
      %p163 = scmp.eq.s32.totalorder %s23, 2
      %p164 = por %p162, %p163
      %p165 = scmp.ne.s32.totalorder %s156, %s157
      %p166 = scmp.eq.s32.totalorder %s23, 0
      %p167 = por %p165, %p166
      %p168 = scmp.ne.s32.totalorder %s156, %s157
      %p169 = scmp.eq.s32.totalorder %s24, 2
      %p170 = por %p168, %p169
      %p172 = scmp.ne.s32.totalorder %s157, %s171
      %p173 = scmp.eq.s32.totalorder %s24, 0
      %p174 = por %p172, %p173
      %s176 = sadd.s32 %s175, 1
      %p179 = scmp.eq.s32.totalorder %s18, 2
      %p180 = scmp.ne.s32.totalorder %s175, %s177
      %p181 = scmp.eq.s32.totalorder %s18, 0
      %p182 = por %p180, %p181
      %p183 = scmp.ne.s32.totalorder %s175, %s177
      %p184 = scmp.eq.s32.totalorder %s23, 2
      %p185 = por %p183, %p184
      %p186 = scmp.ne.s32.totalorder %s177, %s178
      %p187 = scmp.eq.s32.totalorder %s23, 0
      %p188 = por %p186, %p187
      %p189 = scmp.ne.s32.totalorder %s177, %s178
      %p190 = scmp.eq.s32.totalorder %s24, 2
      %p191 = por %p189, %p190
      %p193 = scmp.ne.s32.totalorder %s178, %s192
      %p194 = scmp.eq.s32.totalorder %s24, 0
      %p195 = por %p193, %p194
      %s197 = sadd.s32 %s196, 1
      %p200 = scmp.eq.s32.totalorder %s18, 2
      %p201 = scmp.ne.s32.totalorder %s196, %s198
      %p202 = scmp.eq.s32.totalorder %s18, 0
      %p203 = por %p201, %p202
      %p204 = scmp.ne.s32.totalorder %s196, %s198
      %p205 = scmp.eq.s32.totalorder %s23, 2
      %p206 = por %p204, %p205
      %p207 = scmp.ne.s32.totalorder %s198, %s199
      %p208 = scmp.eq.s32.totalorder %s23, 0
      %p209 = por %p207, %p208
      %p210 = scmp.ne.s32.totalorder %s198, %s199
      %p211 = scmp.eq.s32.totalorder %s24, 2
      %p212 = por %p210, %p211
      %p214 = scmp.ne.s32.totalorder %s199, %s213
      %p215 = scmp.eq.s32.totalorder %s24, 0
      %p216 = por %p214, %p215
      %s218 = sadd.s32 %s217, 1
      %p221 = scmp.eq.s32.totalorder %s18, 2
      %p222 = scmp.ne.s32.totalorder %s217, %s219
      %p223 = scmp.eq.s32.totalorder %s18, 0
      %p224 = por %p222, %p223
      %p225 = scmp.ne.s32.totalorder %s217, %s219
      %p226 = scmp.eq.s32.totalorder %s23, 2
      %p227 = por %p225, %p226
      %p228 = scmp.ne.s32.totalorder %s219, %s220
      %p229 = scmp.eq.s32.totalorder %s23, 0
      %p230 = por %p228, %p229
      %p231 = scmp.ne.s32.totalorder %s219, %s220
      %p232 = scmp.eq.s32.totalorder %s24, 2
      %p233 = por %p231, %p232
      %p235 = scmp.ne.s32.totalorder %s220, %s234
      %p236 = scmp.eq.s32.totalorder %s24, 0
      %p237 = por %p235, %p236
      %p238 = scmp.eq.s32.totalorder %s25, 2
      %s239 = scalar_select %p238, 1, 0
      %s240 = smul.u32 %s26, %s239
      %p241 = scmp.eq.s32.totalorder %s37, 2
      %s242 = scalar_select %p241, 1, 0
      %s243 = smul.u32 %s33, %s242
      %s244 = ssub.s32 %s240, %s243
      %p245 = scmp.eq.s32.totalorder %s244, 0
      %s247 = sadd.s32 %s246, 1
      %s248 = scalar_select %p245, %s246, %s247
      %p251 = pneg %p245
      %p252 = scmp.eq.s32.totalorder %s18, 2
      %p253 = por %p251, %p252
      %p254 = scmp.ne.s32.totalorder %s246, %s249
      %p255 = scmp.eq.s32.totalorder %s18, 0
      %p256 = por %p254, %p255
      %p257 = scmp.ne.s32.totalorder %s246, %s249
      %p258 = scmp.eq.s32.totalorder %s23, 2
      %p259 = por %p257, %p258
      %p260 = scmp.ne.s32.totalorder %s249, %s250
      %p261 = scmp.eq.s32.totalorder %s23, 0
      %p262 = por %p260, %p261
      %p263 = scmp.ne.s32.totalorder %s249, %s250
      %p264 = scmp.eq.s32.totalorder %s24, 2
      %p265 = por %p263, %p264
      %p267 = scmp.ne.s32.totalorder %s250, %s266
      %p268 = scmp.eq.s32.totalorder %s24, 0
      %p269 = por %p267, %p268
      %p270 = scmp.le.s32.totalorder 1, %s18
      %p271 = scmp.lt.s32.totalorder %s18, 4
      %p272 = pnand %p270, %p271
      %p273 = pneg %p272
      // Predicated region
      $region9: #{tpu_custom_call.1} parent=5 // pred_check
        _
      $region10: #{tpu_custom_call.1} parent=5 // pred_check_branch
        %275 = sbr.rel (%p272) target = $region12
      $region11: #{tpu_custom_call.1} parent=5 // pred_region
        %s276 = ssub.s32 %s18, 1
        // Predicated region
        $region13: #{tpu_custom_call.1} parent=11 // pred_check
          %p277 = pneg %p83
        $region14: #{tpu_custom_call.1} parent=11 // pred_check_branch
          %279 = sbr.rel (%p277) target = $region16
        $region15: #{tpu_custom_call.1} parent=11 // pred_region
          _
        $region16: #{tpu_custom_call.1} parent=11 // pred_fallthru
          _
        // Predicated region
        $region17: #{tpu_custom_call.1} parent=11 // pred_check
          %p280 = pneg %p104
        $region18: #{tpu_custom_call.1} parent=11 // pred_check_branch
          %282 = sbr.rel (%p280) target = $region20
        $region19: #{tpu_custom_call.1} parent=11 // pred_region
          _
        $region20: #{tpu_custom_call.1} parent=11 // pred_fallthru
          _
        // Predicated region
        $region21: #{tpu_custom_call.1} parent=11 // pred_check
          %p283 = pneg %p125
        $region22: #{tpu_custom_call.1} parent=11 // pred_check_branch
          %285 = sbr.rel (%p283) target = $region24
        $region23: #{tpu_custom_call.1} parent=11 // pred_region
          _
        $region24: #{tpu_custom_call.1} parent=11 // pred_fallthru
          _
        // Predicated region
        $region25: #{tpu_custom_call.1} parent=11 // pred_check
          %p286 = pneg %p146
        $region26: #{tpu_custom_call.1} parent=11 // pred_check_branch
          %288 = sbr.rel (%p286) target = $region28
        $region27: #{tpu_custom_call.1} parent=11 // pred_region
          _
        $region28: #{tpu_custom_call.1} parent=11 // pred_fallthru
          _
        // Predicated region
        $region29: #{tpu_custom_call.1} parent=11 // pred_check
          %p289 = pneg %p167
        $region30: #{tpu_custom_call.1} parent=11 // pred_check_branch
          %291 = sbr.rel (%p289) target = $region32
        $region31: #{tpu_custom_call.1} parent=11 // pred_region
          _
        $region32: #{tpu_custom_call.1} parent=11 // pred_fallthru
          _
        // Predicated region
        $region33: #{tpu_custom_call.1} parent=11 // pred_check
          %p292 = pneg %p188
        $region34: #{tpu_custom_call.1} parent=11 // pred_check_branch
          %294 = sbr.rel (%p292) target = $region36
        $region35: #{tpu_custom_call.1} parent=11 // pred_region
          _
        $region36: #{tpu_custom_call.1} parent=11 // pred_fallthru
          _
        // Predicated region
        $region37: #{tpu_custom_call.1} parent=11 // pred_check
          %p295 = pneg %p209
        $region38: #{tpu_custom_call.1} parent=11 // pred_check_branch
          %297 = sbr.rel (%p295) target = $region40
        $region39: #{tpu_custom_call.1} parent=11 // pred_region
          _
        $region40: #{tpu_custom_call.1} parent=11 // pred_fallthru
          _
        // Predicated region
        $region41: #{tpu_custom_call.1} parent=11 // pred_check
          %p298 = pneg %p230
        $region42: #{tpu_custom_call.1} parent=11 // pred_check_branch
          %300 = sbr.rel (%p298) target = $region44
        $region43: #{tpu_custom_call.1} parent=11 // pred_region
          _
        $region44: #{tpu_custom_call.1} parent=11 // pred_fallthru
          _
      $region12: #{tpu_custom_call.1} parent=5 // pred_fallthru
        _
      %p301 = scmp.lt.s32.totalorder %s18, 3
      // Predicated region
      $region45: #{tpu_custom_call.1} parent=5 // pred_check
        %p302 = pneg %p301
      $region46: #{tpu_custom_call.1} parent=5 // pred_check_branch
        %304 = sbr.rel (%p302) target = $region48
      $region47: #{tpu_custom_call.1} parent=5 // pred_region
        // Predicated region
        $region49: #{tpu_custom_call.1} parent=47 // pred_check
          %p305 = pneg %p56
        $region50: #{tpu_custom_call.1} parent=47 // pred_check_branch
          %307 = sbr.rel (%p305) target = $region52
        $region51: #{tpu_custom_call.1} parent=47 // pred_region
          %p308 = scmp.eq.s32.totalorder %s25, 0
          %s309 = scalar_select %p308, 1, 0
          %s310 = smul.u32 %s26, %s309
          %s311 = smul.u32 2, %s310
          %p312 = scmp.lt.s32.totalorder %s311, 1
          %s313 = scalar_select %p312, %s311, 1
          %s314 = smul.addr %s313, 2
          %s315 = smul.addr %s314, 4
          %s316 = scalar_lea.vmem %s0, %s315
          %p317 = scmp.eq.s32.totalorder %s25, 0
          %s318 = scalar_select %p317, 1, 0
          %s319 = smul.u32 %s26, %s318
          %s320 = smul.u32 2, %s319
        $region52: #{tpu_custom_call.1} parent=47 // pred_fallthru
          _
      $region48: #{tpu_custom_call.1} parent=5 // pred_fallthru
        _
      %p321 = scmp.le.s32.totalorder 1, %s18
      %p322 = scmp.lt.s32.totalorder %s18, 4
      %p323 = pnand %p321, %p322
      %p324 = pneg %p323
      // Predicated region
      $region53: #{tpu_custom_call.1} parent=5 // pred_check
        _
      $region54: #{tpu_custom_call.1} parent=5 // pred_check_branch
        %326 = sbr.rel (%p323) target = $region56
      $region55: #{tpu_custom_call.1} parent=5 // pred_region
        %s327 = ssub.s32 %s18, 1
        %p328 = scmp.eq.s32.totalorder %s27, 0
        %s329 = scalar_select %p328, 1, 0
        %s330 = smul.u32 %s28, %s329
        %s331 = smul.u32 2, %s330
        %p332 = scmp.lt.s32.totalorder %s331, 1
        %s333 = scalar_select %p332, %s331, 1
        %s334 = smul.addr %s333, 2
        %s335 = smul.addr %s334, 4
        %s336 = scalar_lea.vmem %s0, %s335
        %p337 = pneg %p62
        %p338 = pneg %p59
        %p339 = pneg %p83
        %p340 = pneg %p80
        %p341 = pneg %p104
        %p342 = pneg %p101
        %p343 = pneg %p125
        %p344 = pneg %p122
        %p345 = pneg %p146
        %p346 = pneg %p143
        %p347 = pneg %p167
        %p348 = pneg %p164
        %p349 = pneg %p188
        %p350 = pneg %p185
        %p351 = pneg %p209
        %p352 = pneg %p206
        %p353 = pneg %p230
        %p354 = pneg %p227
        %p355 = pneg %p262
        %p356 = pneg %p259
        %s357 = sand.u32 %s249, 1
        %s358 = scalar_lea.sflag [#allocation8], %s357
        %s359 = sand.u32 %s249, 1
        %s360 = smul.addr %s359, 16
        %s361 = scalar_lea.vmem [#allocation7], %s360
        %p362 = scmp.eq.s32.totalorder %s27, 0
        %s363 = scalar_select %p362, 1, 0
        %s364 = smul.u32 %s28, %s363
        %s365 = smul.u32 2, %s364
        %p366 = scmp.lt.s32.totalorder %s365, 1
        %s367 = scalar_select %p366, %s365, 1
        %s368 = smul.addr %s367, 2
        %s369 = smul.addr %s368, 4
        %s370 = scalar_lea.vmem %s0, %s369
        %p371 = scmp.eq.s32.totalorder %s27, 0
        %s372 = scalar_select %p371, 1, 0
        %s373 = smul.u32 %s28, %s372
        %s374 = smul.u32 2, %s373
        %p375 = scmp.eq.s32.totalorder %s27, 2
        %s376 = scalar_select %p375, 1, 0
        %s377 = smul.u32 %s28, %s376
        %s378 = smul.u32 2, %s377
        %s379 = smul.u32 %s28, 2
        %p380 = scmp.eq.s32.totalorder %s27, 0
        // Predicated region
        $region57: #{tpu_custom_call.1} parent=55 // pred_check
          %p381 = pneg %p380
        $region58: #{tpu_custom_call.1} parent=55 // pred_check_branch
          %383 = sbr.rel (%p381) target = $region60
        $region59: #{tpu_custom_call.1} parent=55 // pred_region
          %p384 = scmp.eq.s32.totalorder %s28, 0
          // Predicated region
          $region61: #{tpu_custom_call.1} parent=59 // pred_check
            %p385 = pneg %p384
          $region62: #{tpu_custom_call.1} parent=59 // pred_check_branch
            %387 = sbr.rel (%p385) target = $region64
          $region63: #{tpu_custom_call.1} parent=59 // pred_region
            %vm388 = vcmask 3072
            %389 = vst.msk [vmem:[#allocation5] sm:$0xf] %vm388, 0.0
            %390 = vst.msk [vmem:[#allocation6] sm:$0xf] %vm388, 0.0
          $region64: #{tpu_custom_call.1} parent=59 // pred_fallthru
            _
          %v391 = vld [vmem:[%s370] sm:$0xff]
          %v392 = vld [vmem:[%s370 + $0x8] sm:$0xff]
          %v393 = vld [vmem:[%s1] sm:$0xf]
          %395 = vset.pattern.permute.xlu0 0
          %396 = vperm.xlu0 %395, %v393
          %v397 = vpop.permute.xlu0 %396
          %v401 = vlaneseq
          %v402 = vshrl.u32 %v401, 7
          %v403 = vsub.s32 0, %v402
          %v404 = vrot.slane %v391, %v403
          %v405 = vlaneseq
          %v406 = vshrl.u32 %v405, 7
          %v407 = vsub.s32 4, %v406
          %v408 = vrot.slane %v391, %v407
          %v409 = vlaneseq
          %v410 = vshrl.u32 %v409, 7
          %v411 = vsub.s32 0, %v410
          %v412 = vrot.slane %v392, %v411
          %v413 = vlaneseq
          %v414 = vshrl.u32 %v413, 7
          %v415 = vsub.s32 4, %v414
          %v416 = vrot.slane %v392, %v415
          %v421 = vlaneseq
          %v422 = vshrl.u32 %v421, 7
          %v423 = vsub.s32 0, %v422
          %v424 = vrot.slane %v404, %v423
          %v425 = vlaneseq
          %v426 = vshrl.u32 %v425, 7
          %v427 = vsub.s32 0, %v426
          %v428 = vrot.slane %v408, %v427
          %v429 = vlaneseq
          %v430 = vshrl.u32 %v429, 7
          %v431 = vsub.s32 0, %v430
          %v432 = vrot.slane %v412, %v431
          %v433 = vlaneseq
          %v434 = vshrl.u32 %v433, 7
          %v435 = vsub.s32 0, %v434
          %v436 = vrot.slane %v416, %v435
          %v437 = vmul.f32 %v397, %v424
          %v438 = vmul.f32 %v397, %v428
          %v439 = vmul.f32 %v397, %v432
          %v440 = vmul.f32 %v397, %v436
          %441 = vset.pattern.permute.xlu0 1
          %442 = vperm.xlu0 %441, %v393
          %v443 = vpop.permute.xlu0 %442
          %v445 = vlaneseq
          %v446 = vshrl.u32 %v445, 7
          %v447 = vsub.s32 1, %v446
          %v448 = vrot.slane %v391, %v447
          %v449 = vlaneseq
          %v450 = vshrl.u32 %v449, 7
          %v451 = vsub.s32 5, %v450
          %v452 = vrot.slane %v391, %v451
          %v453 = vlaneseq
          %v454 = vshrl.u32 %v453, 7
          %v455 = vsub.s32 1, %v454
          %v456 = vrot.slane %v392, %v455
          %v457 = vlaneseq
          %v458 = vshrl.u32 %v457, 7
          %v459 = vsub.s32 5, %v458
          %v460 = vrot.slane %v392, %v459
          %v465 = vlaneseq
          %v466 = vshrl.u32 %v465, 7
          %v467 = vsub.s32 1, %v466
          %v468 = vrot.slane %v448, %v467
          %v469 = vlaneseq
          %v470 = vshrl.u32 %v469, 7
          %v471 = vsub.s32 1, %v470
          %v472 = vrot.slane %v452, %v471
          %v473 = vlaneseq
          %v474 = vshrl.u32 %v473, 7
          %v475 = vsub.s32 1, %v474
          %v476 = vrot.slane %v456, %v475
          %v477 = vlaneseq
          %v478 = vshrl.u32 %v477, 7
          %v479 = vsub.s32 1, %v478
          %v480 = vrot.slane %v460, %v479
          %v481 = vmul.f32 %v443, %v468
          %v482 = vmul.f32 %v443, %v472
          %v483 = vmul.f32 %v443, %v476
          %v484 = vmul.f32 %v443, %v480
          %v485 = vadd.f32 %v437, %v481
          %v486 = vadd.f32 %v438, %v482
          %v487 = vadd.f32 %v439, %v483
          %v488 = vadd.f32 %v440, %v484
          %489 = vset.pattern.permute.xlu0 2
          %490 = vperm.xlu0 %489, %v393
          %v491 = vpop.permute.xlu0 %490
          %v493 = vlaneseq
          %v494 = vshrl.u32 %v493, 7
          %v495 = vsub.s32 2, %v494
          %v496 = vrot.slane %v391, %v495
          %v497 = vlaneseq
          %v498 = vshrl.u32 %v497, 7
          %v499 = vsub.s32 6, %v498
          %v500 = vrot.slane %v391, %v499
          %v501 = vlaneseq
          %v502 = vshrl.u32 %v501, 7
          %v503 = vsub.s32 2, %v502
          %v504 = vrot.slane %v392, %v503
          %v505 = vlaneseq
          %v506 = vshrl.u32 %v505, 7
          %v507 = vsub.s32 6, %v506
          %v508 = vrot.slane %v392, %v507
          %v513 = vlaneseq
          %v514 = vshrl.u32 %v513, 7
          %v515 = vsub.s32 2, %v514
          %v516 = vrot.slane %v496, %v515
          %v517 = vlaneseq
          %v518 = vshrl.u32 %v517, 7
          %v519 = vsub.s32 2, %v518
          %v520 = vrot.slane %v500, %v519
          %v521 = vlaneseq
          %v522 = vshrl.u32 %v521, 7
          %v523 = vsub.s32 2, %v522
          %v524 = vrot.slane %v504, %v523
          %v525 = vlaneseq
          %v526 = vshrl.u32 %v525, 7
          %v527 = vsub.s32 2, %v526
          %v528 = vrot.slane %v508, %v527
          %v529 = vmul.f32 %v491, %v516
          %v530 = vmul.f32 %v491, %v520
          %v531 = vmul.f32 %v491, %v524
          %v532 = vmul.f32 %v491, %v528
          %v533 = vadd.f32 %v485, %v529
          %v534 = vadd.f32 %v486, %v530
          %v535 = vadd.f32 %v487, %v531
          %v536 = vadd.f32 %v488, %v532
          %537 = vset.pattern.permute.xlu0 3
          %538 = vperm.xlu0 %537, %v393
          %v539 = vpop.permute.xlu0 %538
          %v541 = vlaneseq
          %v542 = vshrl.u32 %v541, 7
          %v543 = vsub.s32 3, %v542
          %v544 = vrot.slane %v391, %v543
          %v545 = vlaneseq
          %v546 = vshrl.u32 %v545, 7
          %v547 = vsub.s32 7, %v546
          %v548 = vrot.slane %v391, %v547
          %v549 = vlaneseq
          %v550 = vshrl.u32 %v549, 7
          %v551 = vsub.s32 3, %v550
          %v552 = vrot.slane %v392, %v551
          %v553 = vlaneseq
          %v554 = vshrl.u32 %v553, 7
          %v555 = vsub.s32 7, %v554
          %v556 = vrot.slane %v392, %v555
          %v561 = vlaneseq
          %v562 = vshrl.u32 %v561, 7
          %v563 = vsub.s32 3, %v562
          %v564 = vrot.slane %v544, %v563
          %v565 = vlaneseq
          %v566 = vshrl.u32 %v565, 7
          %v567 = vsub.s32 3, %v566
          %v568 = vrot.slane %v548, %v567
          %v569 = vlaneseq
          %v570 = vshrl.u32 %v569, 7
          %v571 = vsub.s32 3, %v570
          %v572 = vrot.slane %v552, %v571
          %v573 = vlaneseq
          %v574 = vshrl.u32 %v573, 7
          %v575 = vsub.s32 3, %v574
          %v576 = vrot.slane %v556, %v575
          %v577 = vmul.f32 %v539, %v564
          %v578 = vmul.f32 %v539, %v568
          %v579 = vmul.f32 %v539, %v572
          %v580 = vmul.f32 %v539, %v576
          %v581 = vadd.f32 %v533, %v577
          %v582 = vadd.f32 %v534, %v578
          %v583 = vadd.f32 %v535, %v579
          %v584 = vadd.f32 %v536, %v580
          %vm585 = vcmask 1043456
          %v586 = vsel %vm585, %v581, 0.0
          %v587 = vsel %vm585, %v582, 0.0
          %v588 = vadd.f32 %v586, %v587
          %589 = vadd.xlane.f32.xlu0 %v588
          %v590 = vpop.xlane.xlu0 %589
          %v591 = vsel %vm585, %v583, 0.0
          %v592 = vsel %vm585, %v584, 0.0
          %v593 = vadd.f32 %v591, %v592
          %594 = vadd.xlane.f32.xlu0 %v593
          %v595 = vpop.xlane.xlu0 %594
          %v596 = vrcp.pop 256.0
          %v597 = vmul.f32 %v590, %v596
          %v598 = vmul.f32 %v595, %v596
          %v599 = vsub.f32 %v581, %v597
          %v600 = vsub.f32 %v582, %v597
          %v601 = vsub.f32 %v583, %v598
          %v602 = vsub.f32 %v584, %v598
          %v603 = vmul.f32 %v599, %v599
          %v604 = vmul.f32 %v600, %v600
          %v605 = vmul.f32 %v601, %v601
          %v606 = vmul.f32 %v602, %v602
          %v607 = vsel %vm585, %v603, 0.0
          %v608 = vsel %vm585, %v604, 0.0
          %v609 = vadd.f32 %v607, %v608
          %610 = vadd.xlane.f32.xlu0 %v609
          %v611 = vpop.xlane.xlu0 %610
          %v612 = vsel %vm585, %v605, 0.0
          %v613 = vsel %vm585, %v606, 0.0
          %v614 = vadd.f32 %v612, %v613
          %615 = vadd.xlane.f32.xlu0 %v614
          %v616 = vpop.xlane.xlu0 %615
          %v617 = vmul.f32 %v611, %v596
          %v618 = vmul.f32 %v616, %v596
          %v619 = vadd.f32 %v617, 1e-05
          %v620 = vadd.f32 %v618, 1e-05
          %v621 = vrsqrt.pop %v619
          %v622 = vrsqrt.pop %v620
          %v623 = vmul.f32 %v599, %v621
          %v624 = vmul.f32 %v600, %v621
          %v625 = vmul.f32 %v601, %v622
          %v626 = vmul.f32 %v602, %v622
          %v631 = vcombine.low %v623, %v624
          %v632 = vcombine.low %v625, %v626
          %s635 = smul.u32 %s379, 2
          %s636 = smul.addr %s635, 4
          %s637 = scalar_lea.vmem [#allocation2], %s636
          %638 = vst [vmem:[%s637] sm:$0xff] %v631
          %639 = vst [vmem:[%s637 + $0x8] sm:$0xff] %v632
          %s640 = smul.addr %s635, 4
          %s641 = scalar_lea.vmem [#allocation3], %s640
          %642 = vst [vmem:[%s641] sm:$0xff] %v391
          %643 = vst [vmem:[%s641 + $0x8] sm:$0xff] %v392
          %v644 = vld [vmem:[#allocation5] sm:$0xf]
          %v645 = vmul.f32 %v617, 256.0
          %v646 = vmul.f32 %v618, 256.0
          %v647 = vrcp.pop %v619
          %v648 = vmul.f32 %v645, %v647
          %v649 = vrcp.pop %v620
          %v650 = vmul.f32 %v646, %v649
          %v651 = vsel %vm585, %v648, 0.0
          %v652 = vsel %vm585, %v650, 0.0
          %v653 = vadd.f32 %v651, %v652
          %v654 = vadd.f32 %v644, %v653
          %vm655 = vcmask 3072
          %656 = vst.msk [vmem:[#allocation5] sm:$0xf] %vm655, %v654
        $region60: #{tpu_custom_call.1} parent=55 // pred_fallthru
          _
        %p657 = scmp.eq.s32.totalorder %s27, 1
        // Predicated region
        $region65: #{tpu_custom_call.1} parent=55 // pred_check
          %p658 = pneg %p657
        $region66: #{tpu_custom_call.1} parent=55 // pred_check_branch
          %660 = sbr.rel (%p658) target = $region68
        $region67: #{tpu_custom_call.1} parent=55 // pred_region
          %s661 = smul.u32 %s379, 2
          %s662 = smul.addr %s661, 4
          %s663 = scalar_lea.vmem [#allocation2], %s662
          %v664 = vld [vmem:[%s663] sm:$0xff]
          %v665 = vld [vmem:[%s663 + $0x8] sm:$0xff]
          %v666 = vld [vmem:[#allocation5] sm:$0xf]
          %v667 = vmul.f32 %v666, 0.001953125
          %v668 = vld [vmem:[%s3] sm:$0xf]
          %v669 = vadd.f32 %v667, 1e-05
          %v670 = vrsqrt.pop %v669
          %v671 = vmul.f32 %v668, %v670
          %v672 = vld [vmem:[%s4] sm:$0xf]
          %674 = vset.pattern.permute.xlu0 0
          %675 = vperm.xlu0 %674, %v671
          %v676 = vpop.permute.xlu0 %675
          %v678 = vunpack.c.l.s4 839922192
          %v679 = vunpack.c.0.s8 %v678
          %v680 = vlaneseq
          %v681 = vshrl.u32 %v680, 7
          %v682 = vsub.s32 %v679, %v681
          %v683 = vrot.slane %v676, %v682
          %v685 = vmul.f32 %v664, %v683
          %v686 = vmul.f32 %v665, %v683
          %688 = vset.pattern.permute.xlu0 0
          %689 = vperm.xlu0 %688, %v672
          %v690 = vpop.permute.xlu0 %689
          %v692 = vunpack.c.l.s4 839922192
          %v693 = vunpack.c.0.s8 %v692
          %v694 = vlaneseq
          %v695 = vshrl.u32 %v694, 7
          %v696 = vsub.s32 %v693, %v695
          %v697 = vrot.slane %v690, %v696
          %v699 = vadd.f32 %v685, %v697
          %v700 = vadd.f32 %v686, %v697
          %v701 = vmax.f32 %v699, 0.0
          %v702 = vmax.f32 %v700, 0.0
          %v703 = vld [vmem:[%s2] sm:$0xf]
          %705 = vset.pattern.permute.xlu0 0
          %706 = vperm.xlu0 %705, %v703
          %v707 = vpop.permute.xlu0 %706
          %v711 = vlaneseq
          %v712 = vshrl.u32 %v711, 7
          %v713 = vsub.s32 0, %v712
          %v714 = vrot.slane %v701, %v713
          %v715 = vlaneseq
          %v716 = vshrl.u32 %v715, 7
          %v717 = vsub.s32 4, %v716
          %v718 = vrot.slane %v701, %v717
          %v719 = vlaneseq
          %v720 = vshrl.u32 %v719, 7
          %v721 = vsub.s32 0, %v720
          %v722 = vrot.slane %v702, %v721
          %v723 = vlaneseq
          %v724 = vshrl.u32 %v723, 7
          %v725 = vsub.s32 4, %v724
          %v726 = vrot.slane %v702, %v725
          %v731 = vlaneseq
          %v732 = vshrl.u32 %v731, 7
          %v733 = vsub.s32 0, %v732
          %v734 = vrot.slane %v714, %v733
          %v735 = vlaneseq
          %v736 = vshrl.u32 %v735, 7
          %v737 = vsub.s32 0, %v736
          %v738 = vrot.slane %v718, %v737
          %v739 = vlaneseq
          %v740 = vshrl.u32 %v739, 7
          %v741 = vsub.s32 0, %v740
          %v742 = vrot.slane %v722, %v741
          %v743 = vlaneseq
          %v744 = vshrl.u32 %v743, 7
          %v745 = vsub.s32 0, %v744
          %v746 = vrot.slane %v726, %v745
          %v747 = vmul.f32 %v707, %v734
          %v748 = vmul.f32 %v707, %v738
          %v749 = vmul.f32 %v707, %v742
          %v750 = vmul.f32 %v707, %v746
          %751 = vset.pattern.permute.xlu0 1
          %752 = vperm.xlu0 %751, %v703
          %v753 = vpop.permute.xlu0 %752
          %v755 = vlaneseq
          %v756 = vshrl.u32 %v755, 7
          %v757 = vsub.s32 1, %v756
          %v758 = vrot.slane %v701, %v757
          %v759 = vlaneseq
          %v760 = vshrl.u32 %v759, 7
          %v761 = vsub.s32 5, %v760
          %v762 = vrot.slane %v701, %v761
          %v763 = vlaneseq
          %v764 = vshrl.u32 %v763, 7
          %v765 = vsub.s32 1, %v764
          %v766 = vrot.slane %v702, %v765
          %v767 = vlaneseq
          %v768 = vshrl.u32 %v767, 7
          %v769 = vsub.s32 5, %v768
          %v770 = vrot.slane %v702, %v769
          %v775 = vlaneseq
          %v776 = vshrl.u32 %v775, 7
          %v777 = vsub.s32 1, %v776
          %v778 = vrot.slane %v758, %v777
          %v779 = vlaneseq
          %v780 = vshrl.u32 %v779, 7
          %v781 = vsub.s32 1, %v780
          %v782 = vrot.slane %v762, %v781
          %v783 = vlaneseq
          %v784 = vshrl.u32 %v783, 7
          %v785 = vsub.s32 1, %v784
          %v786 = vrot.slane %v766, %v785
          %v787 = vlaneseq
          %v788 = vshrl.u32 %v787, 7
          %v789 = vsub.s32 1, %v788
          %v790 = vrot.slane %v770, %v789
          %v791 = vmul.f32 %v753, %v778
          %v792 = vmul.f32 %v753, %v782
          %v793 = vmul.f32 %v753, %v786
          %v794 = vmul.f32 %v753, %v790
          %v795 = vadd.f32 %v747, %v791
          %v796 = vadd.f32 %v748, %v792
          %v797 = vadd.f32 %v749, %v793
          %v798 = vadd.f32 %v750, %v794
          %799 = vset.pattern.permute.xlu0 2
          %800 = vperm.xlu0 %799, %v703
          %v801 = vpop.permute.xlu0 %800
          %v803 = vlaneseq
          %v804 = vshrl.u32 %v803, 7
          %v805 = vsub.s32 2, %v804
          %v806 = vrot.slane %v701, %v805
          %v807 = vlaneseq
          %v808 = vshrl.u32 %v807, 7
          %v809 = vsub.s32 6, %v808
          %v810 = vrot.slane %v701, %v809
          %v811 = vlaneseq
          %v812 = vshrl.u32 %v811, 7
          %v813 = vsub.s32 2, %v812
          %v814 = vrot.slane %v702, %v813
          %v815 = vlaneseq
          %v816 = vshrl.u32 %v815, 7
          %v817 = vsub.s32 6, %v816
          %v818 = vrot.slane %v702, %v817
          %v823 = vlaneseq
          %v824 = vshrl.u32 %v823, 7
          %v825 = vsub.s32 2, %v824
          %v826 = vrot.slane %v806, %v825
          %v827 = vlaneseq
          %v828 = vshrl.u32 %v827, 7
          %v829 = vsub.s32 2, %v828
          %v830 = vrot.slane %v810, %v829
          %v831 = vlaneseq
          %v832 = vshrl.u32 %v831, 7
          %v833 = vsub.s32 2, %v832
          %v834 = vrot.slane %v814, %v833
          %v835 = vlaneseq
          %v836 = vshrl.u32 %v835, 7
          %v837 = vsub.s32 2, %v836
          %v838 = vrot.slane %v818, %v837
          %v839 = vmul.f32 %v801, %v826
          %v840 = vmul.f32 %v801, %v830
          %v841 = vmul.f32 %v801, %v834
          %v842 = vmul.f32 %v801, %v838
          %v843 = vadd.f32 %v795, %v839
          %v844 = vadd.f32 %v796, %v840
          %v845 = vadd.f32 %v797, %v841
          %v846 = vadd.f32 %v798, %v842
          %847 = vset.pattern.permute.xlu0 3
          %848 = vperm.xlu0 %847, %v703
          %v849 = vpop.permute.xlu0 %848
          %v851 = vlaneseq
          %v852 = vshrl.u32 %v851, 7
          %v853 = vsub.s32 3, %v852
          %v854 = vrot.slane %v701, %v853
          %v855 = vlaneseq
          %v856 = vshrl.u32 %v855, 7
          %v857 = vsub.s32 7, %v856
          %v858 = vrot.slane %v701, %v857
          %v859 = vlaneseq
          %v860 = vshrl.u32 %v859, 7
          %v861 = vsub.s32 3, %v860
          %v862 = vrot.slane %v702, %v861
          %v863 = vlaneseq
          %v864 = vshrl.u32 %v863, 7
          %v865 = vsub.s32 7, %v864
          %v866 = vrot.slane %v702, %v865
          %v871 = vlaneseq
          %v872 = vshrl.u32 %v871, 7
          %v873 = vsub.s32 3, %v872
          %v874 = vrot.slane %v854, %v873
          %v875 = vlaneseq
          %v876 = vshrl.u32 %v875, 7
          %v877 = vsub.s32 3, %v876
          %v878 = vrot.slane %v858, %v877
          %v879 = vlaneseq
          %v880 = vshrl.u32 %v879, 7
          %v881 = vsub.s32 3, %v880
          %v882 = vrot.slane %v862, %v881
          %v883 = vlaneseq
          %v884 = vshrl.u32 %v883, 7
          %v885 = vsub.s32 3, %v884
          %v886 = vrot.slane %v866, %v885
          %v887 = vmul.f32 %v849, %v874
          %v888 = vmul.f32 %v849, %v878
          %v889 = vmul.f32 %v849, %v882
          %v890 = vmul.f32 %v849, %v886
          %v891 = vadd.f32 %v843, %v887
          %v892 = vadd.f32 %v844, %v888
          %v893 = vadd.f32 %v845, %v889
          %v894 = vadd.f32 %v846, %v890
          %vm895 = vcmask 1043456
          %v896 = vsel %vm895, %v891, 0.0
          %v897 = vsel %vm895, %v892, 0.0
          %v898 = vadd.f32 %v896, %v897
          %899 = vadd.xlane.f32.xlu0 %v898
          %v900 = vpop.xlane.xlu0 %899
          %v901 = vsel %vm895, %v893, 0.0
          %v902 = vsel %vm895, %v894, 0.0
          %v903 = vadd.f32 %v901, %v902
          %904 = vadd.xlane.f32.xlu0 %v903
          %v905 = vpop.xlane.xlu0 %904
          %v906 = vrcp.pop 256.0
          %v907 = vmul.f32 %v900, %v906
          %v908 = vmul.f32 %v905, %v906
          %v909 = vsub.f32 %v891, %v907
          %v910 = vsub.f32 %v892, %v907
          %v911 = vsub.f32 %v893, %v908
          %v912 = vsub.f32 %v894, %v908
          %v913 = vmul.f32 %v909, %v909
          %v914 = vmul.f32 %v910, %v910
          %v915 = vmul.f32 %v911, %v911
          %v916 = vmul.f32 %v912, %v912
          %v917 = vsel %vm895, %v913, 0.0
          %v918 = vsel %vm895, %v914, 0.0
          %v919 = vadd.f32 %v917, %v918
          %920 = vadd.xlane.f32.xlu0 %v919
          %v921 = vpop.xlane.xlu0 %920
          %v922 = vsel %vm895, %v915, 0.0
          %v923 = vsel %vm895, %v916, 0.0
          %v924 = vadd.f32 %v922, %v923
          %925 = vadd.xlane.f32.xlu0 %v924
          %v926 = vpop.xlane.xlu0 %925
          %v927 = vmul.f32 %v921, %v906
          %v928 = vmul.f32 %v926, %v906
          %v929 = vadd.f32 %v927, 1e-05
          %v930 = vadd.f32 %v928, 1e-05
          %v931 = vrsqrt.pop %v929
          %v932 = vrsqrt.pop %v930
          %v933 = vmul.f32 %v909, %v931
          %v934 = vmul.f32 %v910, %v931
          %v935 = vmul.f32 %v911, %v932
          %v936 = vmul.f32 %v912, %v932
          %v941 = vcombine.low %v933, %v934
          %v942 = vcombine.low %v935, %v936
          %s945 = smul.addr %s661, 4
          %s946 = scalar_lea.vmem [#allocation4], %s945
          %947 = vst [vmem:[%s946] sm:$0xff] %v941
          %948 = vst [vmem:[%s946 + $0x8] sm:$0xff] %v942
          %v949 = vld [vmem:[#allocation6] sm:$0xf]
          %v950 = vmul.f32 %v927, 256.0
          %v951 = vmul.f32 %v928, 256.0
          %v952 = vrcp.pop %v929
          %v953 = vmul.f32 %v950, %v952
          %v954 = vrcp.pop %v930
          %v955 = vmul.f32 %v951, %v954
          %v956 = vsel %vm895, %v953, 0.0
          %v957 = vsel %vm895, %v955, 0.0
          %v958 = vadd.f32 %v956, %v957
          %v959 = vadd.f32 %v949, %v958
          %vm960 = vcmask 3072
          %961 = vst.msk [vmem:[#allocation6] sm:$0xf] %vm960, %v959
        $region68: #{tpu_custom_call.1} parent=55 // pred_fallthru
          _
        %p962 = scmp.eq.s32.totalorder %s27, 2
        // Predicated region
        $region69: #{tpu_custom_call.1} parent=55 // pred_check
          %p963 = pneg %p962
        $region70: #{tpu_custom_call.1} parent=55 // pred_check_branch
          %965 = sbr.rel (%p963) target = $region72
        $region71: #{tpu_custom_call.1} parent=55 // pred_region
          %s966 = smul.u32 %s379, 2
          %s967 = smul.addr %s966, 4
          %s968 = scalar_lea.vmem [#allocation4], %s967
          %v969 = vld [vmem:[%s968] sm:$0xff]
          %v970 = vld [vmem:[%s968 + $0x8] sm:$0xff]
          %v971 = vld [vmem:[#allocation6] sm:$0xf]
          %v972 = vmul.f32 %v971, 0.001953125
          %v973 = vld [vmem:[%s5] sm:$0xf]
          %v974 = vadd.f32 %v972, 1e-05
          %v975 = vrsqrt.pop %v974
          %v976 = vmul.f32 %v973, %v975
          %v977 = vld [vmem:[%s6] sm:$0xf]
          %979 = vset.pattern.permute.xlu0 0
          %980 = vperm.xlu0 %979, %v976
          %v981 = vpop.permute.xlu0 %980
          %v983 = vunpack.c.l.s4 839922192
          %v984 = vunpack.c.0.s8 %v983
          %v985 = vlaneseq
          %v986 = vshrl.u32 %v985, 7
          %v987 = vsub.s32 %v984, %v986
          %v988 = vrot.slane %v981, %v987
          %v990 = vmul.f32 %v969, %v988
          %v991 = vmul.f32 %v970, %v988
          %993 = vset.pattern.permute.xlu0 0
          %994 = vperm.xlu0 %993, %v977
          %v995 = vpop.permute.xlu0 %994
          %v997 = vunpack.c.l.s4 839922192
          %v998 = vunpack.c.0.s8 %v997
          %v999 = vlaneseq
          %v1000 = vshrl.u32 %v999, 7
          %v1001 = vsub.s32 %v998, %v1000
          %v1002 = vrot.slane %v995, %v1001
          %v1004 = vadd.f32 %v990, %v1002
          %v1005 = vadd.f32 %v991, %v1002
          %s1006 = smul.addr %s966, 4
          %s1007 = scalar_lea.vmem [#allocation3], %s1006
          %v1008 = vld [vmem:[%s1007] sm:$0xff]
          %v1009 = vld [vmem:[%s1007 + $0x8] sm:$0xff]
          %v1010 = vadd.f32 %v1004, %v1008
          %v1011 = vadd.f32 %v1005, %v1009
          %v1012 = vmax.f32 %v1010, 0.0
          %v1013 = vmax.f32 %v1011, 0.0
          %1014 = vst [vmem:[%s361] sm:$0xff] %v1012
          %1015 = vst [vmem:[%s361 + $0x8] sm:$0xff] %v1013
        $region72: #{tpu_custom_call.1} parent=55 // pred_fallthru
          _
        %s1016 = sand.u32 %s249, 1
        %s1017 = scalar_lea.sflag [#allocation8], %s1016
        %s1018 = sand.u32 %s249, 1
        %s1019 = smul.addr %s1018, 16
        %s1020 = scalar_lea.vmem [#allocation7], %s1019
        // Predicated region
        $region73: #{tpu_custom_call.1} parent=55 // pred_check
          %p1021 = pneg %p259
        $region74: #{tpu_custom_call.1} parent=55 // pred_check_branch
          %1023 = sbr.rel (%p1021) target = $region76
        $region75: #{tpu_custom_call.1} parent=55 // pred_region
          %p1024 = scmp.eq.s32.totalorder %s27, 2
          %s1025 = scalar_select %p1024, 1, 0
          %s1026 = smul.u32 %s28, %s1025
          %s1027 = smul.u32 2, %s1026
          %s1029 = ssub.s32 256, 256
          %1030 = vsyncadd %s1017, %s1029
          %s1031 = smul.addr %s1027, 2
          %s1032 = smul.addr %s1031, 64
          %s1033 = scalar_lea.hbm %s9, %s1032
          %s1034 = sshll.u32 %s1020, 4
          %s1035 = int_to_ptr.vmem [resolvable:$true] %s1034
          %1040 = dma.vmem_to_hbm [thread:$0]  %s1035, 256, %s1033, %s1017, 128, 128, 8
        $region76: #{tpu_custom_call.1} parent=55 // pred_fallthru
          _
      $region56: #{tpu_custom_call.1} parent=5 // pred_fallthru
        _
      %p1041 = scmp.le.s32.totalorder 2, %s18
      // Predicated region
      $region77: #{tpu_custom_call.1} parent=5 // pred_check
        %p1042 = pneg %p1041
      $region78: #{tpu_custom_call.1} parent=5 // pred_check_branch
        %1044 = sbr.rel (%p1042) target = $region80
      $region79: #{tpu_custom_call.1} parent=5 // pred_region
        %s1045 = ssub.s32 %s18, 2
        // Predicated region
        $region81: #{tpu_custom_call.1} parent=79 // pred_check
          %p1046 = pneg %p265
        $region82: #{tpu_custom_call.1} parent=79 // pred_check_branch
          %1048 = sbr.rel (%p1046) target = $region84
        $region83: #{tpu_custom_call.1} parent=79 // pred_region
          %s1049 = sand.u32 %s250, 1
          %s1050 = scalar_lea.sflag [#allocation8], %s1049
          %s1051 = sand.u32 %s250, 1
          %s1052 = smul.addr %s1051, 16
          %s1053 = scalar_lea.vmem [#allocation7], %s1052
          %1054 = dma.done %s1050, 256
        $region84: #{tpu_custom_call.1} parent=79 // pred_fallthru
          _
      $region80: #{tpu_custom_call.1} parent=5 // pred_fallthru
        _
    $region6: #{tpu_custom_call.1} parent=1 // loop_footer
      %s22 = sadd.s32 1, %s18
    $region7: #{tpu_custom_call.1} parent=1 // loop_footer_branch
      %17 = sbr.rel target = $region3
    $region8: #{tpu_custom_call.1} parent=1 // loop_exit
      _
    %1055 = vsyncpa [#allocation8], 1
    %s1056 = scalar_lea.sflag [#allocation8], 1
    %1057 = vsyncpa %s1056, 1

</llo_original>
